<compile_context>
chip_gen: v6e
topology: v6e:2x2x1
jax: 0.10.0
libtpu: 0.0.40
codegen_flags: <defaults>
</compile_context>

<pallas_src>
import functools

import jax
import jax.numpy as jnp
from jax.experimental import pallas as pl
from jax.experimental.pallas import tpu as pltpu


def _round_up(x, m):
    return (x + m - 1) // m * m


def _supcon_kernel(a_ref, ct_ref, rlab_ref, clab_ref, loss_ref,
                   m_sc, l_sc, psum_sc, pcnt_sc, *,
                   tm, tn, n_contrast, n_contrast_pad, scale,
                   use_online_max, max_bound):
    i = pl.program_id(0)          # anchor-row tile  ("parallel")
    j = pl.program_id(1)          # contrast-column tile (reduction, "arbitrary")
    nj = pl.num_programs(1)

    @pl.when(j == 0)
    def _():
        if use_online_max:
            m_sc[...] = jnp.full((tm, 1), -jnp.inf, jnp.float32)
        l_sc[...] = jnp.zeros((tm, 1), jnp.float32)
        psum_sc[...] = jnp.zeros((tm, 1), jnp.float32)
        pcnt_sc[...] = jnp.zeros((tm, 1), jnp.float32)

    # (tm, tn) logits tile on the MXU.  Inputs are bf16, 1/temperature is
    # already folded into the anchor, RHS is the pre-transposed (d, N) slab.
    s = jax.lax.dot_general(
        a_ref[...], ct_ref[...],
        dimension_numbers=(((1,), (0,)), ((), ())),
        preferred_element_type=jnp.float32,
    )

    # Positive mask from label equality ((tm,1)==(1,tn) broadcast).
    same_label = rlab_ref[...] == clab_ref[...]

    # Scalar gate: does this tile need the diagonal / padding masks?
    row_lo = i * tm
    col_lo = j * tn
    diag_overlap = jnp.logical_and(row_lo < col_lo + tn, col_lo < row_lo + tm)
    if n_contrast_pad > n_contrast:               # static: padded columns exist?
        needs_mask = jnp.logical_or(diag_overlap, j == nj - 1)
    else:
        needs_mask = diag_overlap

    def masked_step():
        row_ids = row_lo + jax.lax.broadcasted_iota(jnp.int32, (tm, tn), 0)
        col_ids = col_lo + jax.lax.broadcasted_iota(jnp.int32, (tm, tn), 1)
        col_valid = col_ids < n_contrast
        logits_mask = jnp.logical_and(col_valid, row_ids != col_ids)
        pos_mask = jnp.logical_and(same_label, logits_mask).astype(jnp.float32)
        if use_online_max:
            # Max over valid columns only (diag included: max cancels exactly
            # and keeping it guarantees a finite running max).
            s_max = jnp.max(jnp.where(col_valid, s, -jnp.inf),
                            axis=1, keepdims=True)
            m_new = jnp.maximum(m_sc[...], s_max)
            alpha = jnp.exp(m_sc[...] - m_new)
            p = jnp.where(logits_mask, jnp.exp(s - m_new), 0.0)
            l_sc[...] = alpha * l_sc[...] + jnp.sum(p, axis=1, keepdims=True)
            m_sc[...] = m_new
        else:
            p = jnp.where(logits_mask, jnp.exp(s - max_bound), 0.0)
            l_sc[...] = l_sc[...] + jnp.sum(p, axis=1, keepdims=True)
        psum_sc[...] += jnp.sum(pos_mask * s, axis=1, keepdims=True)
        pcnt_sc[...] += jnp.sum(pos_mask, axis=1, keepdims=True)

    def fast_step():
        # No diagonal and no padded columns in this tile: logits_mask == True.
        pos_mask = same_label.astype(jnp.float32)
        if use_online_max:
            s_max = jnp.max(s, axis=1, keepdims=True)
            m_new = jnp.maximum(m_sc[...], s_max)
            alpha = jnp.exp(m_sc[...] - m_new)
            p = jnp.exp(s - m_new)
            l_sc[...] = alpha * l_sc[...] + jnp.sum(p, axis=1, keepdims=True)
            m_sc[...] = m_new
        else:
            p = jnp.exp(s - max_bound)
            l_sc[...] = l_sc[...] + jnp.sum(p, axis=1, keepdims=True)
        psum_sc[...] += jnp.sum(pos_mask * s, axis=1, keepdims=True)
        pcnt_sc[...] += jnp.sum(pos_mask, axis=1, keepdims=True)

    pl.when(needs_mask)(masked_step)
    pl.when(jnp.logical_not(needs_mask))(fast_step)

    @pl.when(j == nj - 1)
    def _():
        mask_sum = pcnt_sc[...]
        if use_online_max:
            lse = m_sc[...] + jnp.log(l_sc[...])
        else:
            lse = max_bound + jnp.log(l_sc[...])
        safe = jnp.where(mask_sum == 0.0, 1.0, mask_sum)      # torch: mask_sum[==0]+=1
        mean_log_prob_pos = (psum_sc[...] - mask_sum * lse) / safe
        loss_ref[...] = (-scale) * mean_log_prob_pos          # per-anchor-row loss


def supcon_loss(features, labels=None, mask=None, *, temperature=0.07,
                contrast_mode="all", base_temperature=0.07,
                tile_rows=256, tile_cols=512, use_online_max=True,
                vmem_limit_bytes=None):
    """Pallas-backed SupConLoss forward.

    features: (bsz, n_views, ...) float; labels: (bsz,) int or None (SimCLR).
    use_online_max=False assumes the (standard) L2-normalized-feature setting
    and replaces the running max with the constant bound 1/temperature.
    Returns a scalar f32 loss matching the torch module.
    """
    if features.ndim < 3:
        raise ValueError("`features` needs to be [bsz, n_views, ...]")
    bsz, n_views = features.shape[0], features.shape[1]
    feats = features.reshape(bsz, n_views, -1).astype(jnp.float32)
    d = feats.shape[-1]

    if labels is not None and mask is not None:
        raise ValueError("Cannot define both `labels` and `mask`")
    if mask is not None:
        # TODO(synk): arbitrary (possibly asymmetric) contrast `mask` is not
        # expressible as the in-kernel label-equality compare; only the labels
        # / SimCLR (labels=None -> eye mask) paths are supported.
        raise NotImplementedError("explicit `mask` argument not supported")
    if labels is None:
        labels = jnp.arange(bsz, dtype=jnp.int32)     # eye(bsz) mask == unique labels
    labels = labels.reshape(-1).astype(jnp.int32)
    if labels.shape[0] != bsz:
        raise ValueError("Num of labels does not match num of features")

    inv_temp = float(1.0 / temperature)

    # contrast_feature = cat(unbind(features, dim=1), dim=0): row v*bsz+b = (b, v)
    contrast = jnp.transpose(feats, (1, 0, 2)).reshape(n_views * bsz, d)
    contrast_labels = jnp.tile(labels, n_views)

    if contrast_mode == "one":
        anchor, anchor_labels = feats[:, 0], labels
    elif contrast_mode == "all":
        anchor, anchor_labels = contrast, contrast_labels
    else:
        raise ValueError(f"Unknown mode: {contrast_mode}")

    n_anchor, n_contrast = anchor.shape[0], contrast.shape[0]

    # --- tile sizes -----------------------------------------------------------
    # Row tiles 8-aligned; column tiles 128-aligned (lane-dense logits tile).
    tm = _round_up(n_anchor, 8) if n_anchor <= tile_rows else tile_rows
    # v7x megacore: guarantee >= 2 row tiles when the anchor dim allows it so
    # the "parallel" row axis can shard across both TensorCores.
    if n_anchor > 8 and _round_up(n_anchor, tm) // tm < 2:
        tm = _round_up((n_anchor + 1) // 2, 8)
    if n_contrast <= tile_cols:
        tn = _round_up(n_contrast, 128)
    else:
        assert tile_cols % 128 == 0, "tile_cols must be a multiple of 128 when gridded"
        tn = tile_cols
    assert tm % 8 == 0 and tn % 128 == 0

    n_anchor_pad = _round_up(n_anchor, tm)
    n_contrast_pad = _round_up(n_contrast, tn)

    # --- wrapper-side bf16 cast (+ inv_temp fold) and layout -----------------
    anchor_bf = (anchor * inv_temp).astype(jnp.bfloat16)
    contrast_bf = contrast.astype(jnp.bfloat16)
    anchor_p = jnp.pad(anchor_bf, ((0, n_anchor_pad - n_anchor), (0, 0)))
    contrast_t = jnp.pad(
        contrast_bf, ((0, n_contrast_pad - n_contrast), (0, 0))).T   # (d, N_pad)

    # Padding sentinels: padded anchor rows (-1) are sliced out of the mean and
    # padded contrast columns (-2) are removed by col_valid, so a user label of
    # -1/-2 cannot leak into the result.
    rlab = jnp.pad(anchor_labels, (0, n_anchor_pad - n_anchor),
                   constant_values=-1).reshape(n_anchor_pad, 1)
    clab = jnp.pad(contrast_labels, (0, n_contrast_pad - n_contrast),
                   constant_values=-2).reshape(1, n_contrast_pad)

    grid = (n_anchor_pad // tm, n_contrast_pad // tn)

    kernel = functools.partial(
        _supcon_kernel, tm=tm, tn=tn,
        n_contrast=int(n_contrast), n_contrast_pad=int(n_contrast_pad),
        scale=float(temperature / base_temperature),
        use_online_max=bool(use_online_max),
        # Constant logit bound for the fast-max path: |a.c|/T <= 1/T for
        # unit-normalized features (inv_temp is already folded into `a`).
        max_bound=inv_temp)

    # TODO(synk): for d in the multi-thousand range add a third "arbitrary"
    # grid axis over d with a (tm, tn) partial-logits accumulator to stay
    # inside the v7x 32 MiB scoped VMEM budget.
    per_row = pl.pallas_call(
        kernel,
        out_shape=jax.ShapeDtypeStruct((n_anchor_pad, 1), jnp.float32),
        grid_spec=pltpu.PrefetchScalarGridSpec(
            num_scalar_prefetch=0,
            grid=grid,
            in_specs=[
                pl.BlockSpec((tm, d), lambda i, j: (i, 0)),   # anchor rows (bf16, /T)
                pl.BlockSpec((d, tn), lambda i, j: (0, j)),   # contrast (d, N) cols
                pl.BlockSpec((tm, 1), lambda i, j: (i, 0)),   # row labels
                pl.BlockSpec((1, tn), lambda i, j: (0, j)),   # col labels (lane-dense)
            ],
            out_specs=pl.BlockSpec((tm, 1), lambda i, j: (i, 0)),
            scratch_shapes=[pltpu.VMEM((tm, 1), jnp.float32)] * 4,  # m, l, psum, pcnt
        ),
        compiler_params=pltpu.CompilerParams(
            dimension_semantics=("parallel", "arbitrary"),
            vmem_limit_bytes=vmem_limit_bytes),
    )(anchor_p, contrast_t, rlab, clab)

    # loss.view(anchor_count, batch_size).mean() == mean over all anchor rows.
    return jnp.mean(per_row[:n_anchor, 0])


def _reference_supcon(features, labels=None, temperature=0.07,
                      contrast_mode="all", base_temperature=0.07):
    """Pure-JAX f32 mirror of the torch forward (for verification)."""
    bsz, n_views = features.shape[0], features.shape[1]
    feats = features.reshape(bsz, n_views, -1).astype(jnp.float32)
    if labels is None:
        base_mask = jnp.eye(bsz, dtype=jnp.float32)
    else:
        lab = labels.reshape(-1, 1)
        base_mask = (lab == lab.T).astype(jnp.float32)
    contrast = jnp.transpose(feats, (1, 0, 2)).reshape(n_views * bsz, -1)
    if contrast_mode == "one":
        anchor, anchor_count = feats[:, 0], 1
    else:
        anchor, anchor_count = contrast, n_views
    adc = (anchor @ contrast.T) / temperature
    logits = adc - jnp.max(adc, axis=1, keepdims=True)
    big_mask = jnp.tile(base_mask, (anchor_count, n_views))
    n_anchor, n_contrast = anchor.shape[0], contrast.shape[0]
    logits_mask = 1.0 - jnp.eye(n_anchor, n_contrast, dtype=jnp.float32)
    big_mask = big_mask * logits_mask
    exp_logits = jnp.exp(logits) * logits_mask
    log_prob = logits - jnp.log(jnp.sum(exp_logits, axis=1, keepdims=True))
    mask_sum = jnp.sum(big_mask, axis=1)
    mask_sum = jnp.where(mask_sum == 0, 1.0, mask_sum)
    mean_log_prob_pos = jnp.sum(big_mask * log_prob, axis=1) / mask_sum
    return jnp.mean(-(temperature / base_temperature) * mean_log_prob_pos)


if __name__ == "__main__":
    key = jax.random.PRNGKey(0)
    kf, kl, kf2, kl2 = jax.random.split(key, 4)

    # --- small shapes: supervised 'all', SimCLR, and 'one' paths -------------
    bsz, n_views, dim = 8, 2, 32
    features = jax.random.normal(kf, (bsz, n_views, dim), dtype=jnp.float32)
    # SupCon operates on unit-normalized embeddings (as in the paper).
    features = features / jnp.linalg.norm(features, axis=-1, keepdims=True)
    labels = jax.random.randint(kl, (bsz,), 0, 4, dtype=jnp.int32)

    loss = jax.block_until_ready(supcon_loss(features, labels, temperature=0.07))
    ref = _reference_supcon(features, labels, temperature=0.07)
    assert bool(jnp.isfinite(loss)), loss
    # Tolerance accounts for the bf16 MXU inputs (f32 accumulation).
    assert jnp.allclose(loss, ref, rtol=3e-2, atol=3e-2), (loss, ref)

    loss_u = jax.block_until_ready(supcon_loss(features, None, temperature=0.07))
    ref_u = _reference_supcon(features, None, temperature=0.07)
    assert jnp.allclose(loss_u, ref_u, rtol=3e-2, atol=3e-2), (loss_u, ref_u)

    loss_o = jax.block_until_ready(
        supcon_loss(features, labels, temperature=0.07, contrast_mode="one"))
    ref_o = _reference_supcon(features, labels, temperature=0.07,
                              contrast_mode="one")
    assert jnp.allclose(loss_o, ref_o, rtol=3e-2, atol=3e-2), (loss_o, ref_o)

    # --- medium shapes: multi-tile grid exercising the diagonal-gated fast
    #     path and the constant-max (normalized-feature) path ------------------
    bsz2, n_views2, dim2 = 128, 2, 64
    f2 = jax.random.normal(kf2, (bsz2, n_views2, dim2), dtype=jnp.float32)
    f2 = f2 / jnp.linalg.norm(f2, axis=-1, keepdims=True)
    l2 = jax.random.randint(kl2, (bsz2,), 0, 16, dtype=jnp.int32)
    loss2 = jax.block_until_ready(
        supcon_loss(f2, l2, temperature=0.07, tile_rows=128, tile_cols=128,
                    use_online_max=False))
    ref2 = _reference_supcon(f2, l2, temperature=0.07)
    assert bool(jnp.isfinite(loss2)), loss2
    assert jnp.allclose(loss2, ref2, rtol=3e-2, atol=3e-2), (loss2, ref2)

    print("KERNEL_OK")
</pallas_src>

<mosaic_0001>
module attributes {stable_mosaic.version = 11 : i64} {
  func.func @_supcon_kernel(%arg0: i32, %arg1: i32, %arg2: memref<8x32xbf16, #tpu.memory_space<vmem>>, %arg3: memref<32x128xbf16, #tpu.memory_space<vmem>>, %arg4: memref<8x1xi32, #tpu.memory_space<vmem>>, %arg5: memref<1x128xi32, #tpu.memory_space<vmem>>, %arg6: memref<8x1xf32, #tpu.memory_space<vmem>>, %arg7: memref<8x1xf32, #tpu.memory_space<vmem>>, %arg8: memref<8x1xf32, #tpu.memory_space<vmem>>, %arg9: memref<8x1xf32, #tpu.memory_space<vmem>>, %arg10: memref<8x1xf32, #tpu.memory_space<vmem>>) attributes {dimension_semantics = [#tpu.dimension_semantics<parallel>, #tpu.dimension_semantics<arbitrary>], iteration_bounds = array<i64: 2, 1>, scalar_prefetch = 0 : i64, scratch_operands = 4 : i64, tpu.core_type = #tpu.core_type<tc>, window_params = [{transform_indices = @transform_0, window_bounds = array<i64: 8, 32>}, {transform_indices = @transform_1, window_bounds = array<i64: 32, 128>}, {transform_indices = @transform_2, window_bounds = array<i64: 8, 1>}, {transform_indices = @transform_3, window_bounds = array<i64: 1, 128>}, {transform_indices = @transform_4, window_bounds = array<i64: 8, 1>}]} {
    %c0_i32 = arith.constant 0 : i32
    %0 = arith.cmpi eq, %arg1, %c0_i32 : i32
    %1 = arith.extui %0 : i1 to i32
    %c0_i32_0 = arith.constant 0 : i32
    %2 = arith.cmpi ne, %1, %c0_i32_0 : i32
    scf.if %2 {
      %cst_15 = arith.constant 0xFF800000 : f32
      %28 = vector.broadcast %cst_15 : f32 to vector<8x1xf32>
      %c0_16 = arith.constant 0 : index
      %c0_17 = arith.constant 0 : index
      %29 = vector.load %arg7[%c0_16, %c0_17] : memref<8x1xf32, #tpu.memory_space<vmem>>, vector<8x1xf32>
      tpu.vector_store %arg7[%c0_16, %c0_17], %28 {strides = array<i32>} : memref<8x1xf32, #tpu.memory_space<vmem>>, vector<8x1xf32>,
      %cst_18 = arith.constant 0.000000e+00 : f32
      %30 = vector.broadcast %cst_18 : f32 to vector<8x1xf32>
      %c0_19 = arith.constant 0 : index
      %c0_20 = arith.constant 0 : index
      %31 = vector.load %arg8[%c0_19, %c0_20] : memref<8x1xf32, #tpu.memory_space<vmem>>, vector<8x1xf32>
      tpu.vector_store %arg8[%c0_19, %c0_20], %30 {strides = array<i32>} : memref<8x1xf32, #tpu.memory_space<vmem>>, vector<8x1xf32>,
      %cst_21 = arith.constant 0.000000e+00 : f32
      %32 = vector.broadcast %cst_21 : f32 to vector<8x1xf32>
      %c0_22 = arith.constant 0 : index
      %c0_23 = arith.constant 0 : index
      %33 = vector.load %arg9[%c0_22, %c0_23] : memref<8x1xf32, #tpu.memory_space<vmem>>, vector<8x1xf32>
      tpu.vector_store %arg9[%c0_22, %c0_23], %32 {strides = array<i32>} : memref<8x1xf32, #tpu.memory_space<vmem>>, vector<8x1xf32>,
      %cst_24 = arith.constant 0.000000e+00 : f32
      %34 = vector.broadcast %cst_24 : f32 to vector<8x1xf32>
      %c0_25 = arith.constant 0 : index
      %c0_26 = arith.constant 0 : index
      %35 = vector.load %arg10[%c0_25, %c0_26] : memref<8x1xf32, #tpu.memory_space<vmem>>, vector<8x1xf32>
      tpu.vector_store %arg10[%c0_25, %c0_26], %34 {strides = array<i32>} : memref<8x1xf32, #tpu.memory_space<vmem>>, vector<8x1xf32>,
    } else {
    }
    %c0 = arith.constant 0 : index
    %c0_1 = arith.constant 0 : index
    %3 = vector.load %arg2[%c0, %c0_1] : memref<8x32xbf16, #tpu.memory_space<vmem>>, vector<8x32xbf16>
    %c0_2 = arith.constant 0 : index
    %c0_3 = arith.constant 0 : index
    %4 = vector.load %arg3[%c0_2, %c0_3] : memref<32x128xbf16, #tpu.memory_space<vmem>>, vector<32x128xbf16>
    %cst = arith.constant dense<0.000000e+00> : vector<8x128xf32>
    %5 = tpu.matmul %3, %4, %cst {dimension_numbers = #tpu.dot_dimension_numbers<[1], [0], [0], [1], [0, 0, 1, 1], [], []>} : vector<8x32xbf16>, vector<32x128xbf16>, vector<8x128xf32> -> vector<8x128xf32>
    %c0_4 = arith.constant 0 : index
    %c0_5 = arith.constant 0 : index
    %6 = vector.load %arg4[%c0_4, %c0_5] : memref<8x1xi32, #tpu.memory_space<vmem>>, vector<8x1xi32>
    %c0_6 = arith.constant 0 : index
    %c0_7 = arith.constant 0 : index
    %7 = vector.load %arg5[%c0_6, %c0_7] : memref<1x128xi32, #tpu.memory_space<vmem>>, vector<1x128xi32>
    %8 = vector.broadcast %6 : vector<8x1xi32> to vector<8x128xi32>
    %9 = vector.broadcast %7 : vector<1x128xi32> to vector<8x128xi32>
    %10 = arith.cmpi eq, %8, %9 : vector<8x128xi32>
    %c8_i32 = arith.constant 8 : i32
    %11 = arith.muli %arg0, %c8_i32 : i32
    %c128_i32 = arith.constant 128 : i32
    %12 = arith.muli %arg1, %c128_i32 : i32
    %c128_i32_8 = arith.constant 128 : i32
    %13 = arith.addi %12, %c128_i32_8 : i32
    %14 = arith.cmpi slt, %11, %13 : i32
    %c8_i32_9 = arith.constant 8 : i32
    %15 = arith.addi %11, %c8_i32_9 : i32
    %16 = arith.cmpi slt, %12, %15 : i32
    %17 = arith.andi %14, %16 : i1
    %c0_i32_10 = arith.constant 0 : i32
    %18 = arith.cmpi eq, %arg1, %c0_i32_10 : i32
    %19 = arith.ori %17, %18 : i1
    %20 = arith.extui %19 : i1 to i32
    %c0_i32_11 = arith.constant 0 : i32
    %21 = arith.cmpi ne, %20, %c0_i32_11 : i32
    scf.if %21 {
      %28 = tpu.iota {dimensions = array<i32: 0>} : vector<8x128xi32>
      %29 = vector.broadcast %11 : i32 to vector<8x128xi32>
      %30 = arith.addi %29, %28 : vector<8x128xi32>
      %31 = tpu.iota {dimensions = array<i32: 1>} : vector<8x128xi32>
      %32 = vector.broadcast %12 : i32 to vector<8x128xi32>
      %33 = arith.addi %32, %31 : vector<8x128xi32>
      %c16_i32 = arith.constant 16 : i32
      %34 = vector.broadcast %c16_i32 : i32 to vector<8x128xi32>
      %35 = arith.cmpi slt, %33, %34 : vector<8x128xi32>
      %36 = arith.cmpi ne, %30, %33 : vector<8x128xi32>
      %37 = arith.andi %35, %36 : vector<8x128xi1>
      %38 = arith.andi %10, %37 : vector<8x128xi1>
      %39 = arith.extui %38 : vector<8x128xi1> to vector<8x128xi32>
      %40 = arith.sitofp %39 : vector<8x128xi32> to vector<8x128xf32>
      %cst_15 = arith.constant 0xFF800000 : f32
      %41 = vector.broadcast %cst_15 : f32 to vector<8x128xf32>
      %42 = arith.select %35, %5, %41 : vector<8x128xi1>, vector<8x128xf32>
      %cst_16 = arith.constant dense<0xFF800000> : vector<8xf32>
      %43 = vector.multi_reduction <maximumf>, %42, %cst_16 [1] : vector<8x128xf32> to vector<8xf32>
      %44 = vector.shape_cast %43 : vector<8xf32> to vector<8x1xf32>
      %c0_17 = arith.constant 0 : index
      %c0_18 = arith.constant 0 : index
      %45 = vector.load %arg7[%c0_17, %c0_18] : memref<8x1xf32, #tpu.memory_space<vmem>>, vector<8x1xf32>
      %46 = arith.maximumf %45, %44 : vector<8x1xf32>
      %c0_19 = arith.constant 0 : index
      %c0_20 = arith.constant 0 : index
      %47 = vector.load %arg7[%c0_19, %c0_20] : memref<8x1xf32, #tpu.memory_space<vmem>>, vector<8x1xf32>
      %48 = arith.subf %47, %46 : vector<8x1xf32>
      %49 = math.exp %48 : vector<8x1xf32>
      %50 = vector.broadcast %46 : vector<8x1xf32> to vector<8x128xf32>
      %51 = arith.subf %5, %50 : vector<8x128xf32>
      %52 = math.exp %51 : vector<8x128xf32>
      %cst_21 = arith.constant 0.000000e+00 : f32
      %53 = vector.broadcast %cst_21 : f32 to vector<8x128xf32>
      %54 = arith.select %37, %52, %53 : vector<8x128xi1>, vector<8x128xf32>
      %c0_22 = arith.constant 0 : index
      %c0_23 = arith.constant 0 : index
      %55 = vector.load %arg8[%c0_22, %c0_23] : memref<8x1xf32, #tpu.memory_space<vmem>>, vector<8x1xf32>
      %56 = arith.mulf %49, %55 : vector<8x1xf32>
      %cst_24 = arith.constant dense<0.000000e+00> : vector<8xf32>
      %57 = vector.multi_reduction <add>, %54, %cst_24 [1] : vector<8x128xf32> to vector<8xf32>
      %58 = vector.shape_cast %57 : vector<8xf32> to vector<8x1xf32>
      %59 = arith.addf %56, %58 : vector<8x1xf32>
      %c0_25 = arith.constant 0 : index
      %c0_26 = arith.constant 0 : index
      %60 = vector.load %arg8[%c0_25, %c0_26] : memref<8x1xf32, #tpu.memory_space<vmem>>, vector<8x1xf32>
      tpu.vector_store %arg8[%c0_25, %c0_26], %59 {strides = array<i32>} : memref<8x1xf32, #tpu.memory_space<vmem>>, vector<8x1xf32>,
      %c0_27 = arith.constant 0 : index
      %c0_28 = arith.constant 0 : index
      %61 = vector.load %arg7[%c0_27, %c0_28] : memref<8x1xf32, #tpu.memory_space<vmem>>, vector<8x1xf32>
      tpu.vector_store %arg7[%c0_27, %c0_28], %46 {strides = array<i32>} : memref<8x1xf32, #tpu.memory_space<vmem>>, vector<8x1xf32>,
      %c0_29 = arith.constant 0 : index
      %c0_30 = arith.constant 0 : index
      %62 = vector.load %arg9[%c0_29, %c0_30] : memref<8x1xf32, #tpu.memory_space<vmem>>, vector<8x1xf32>
      %63 = arith.mulf %40, %5 : vector<8x128xf32>
      %cst_31 = arith.constant dense<0.000000e+00> : vector<8xf32>
      %64 = vector.multi_reduction <add>, %63, %cst_31 [1] : vector<8x128xf32> to vector<8xf32>
      %65 = vector.shape_cast %64 : vector<8xf32> to vector<8x1xf32>
      %66 = arith.addf %62, %65 : vector<8x1xf32>
      %c0_32 = arith.constant 0 : index
      %c0_33 = arith.constant 0 : index
      %67 = vector.load %arg9[%c0_32, %c0_33] : memref<8x1xf32, #tpu.memory_space<vmem>>, vector<8x1xf32>
      tpu.vector_store %arg9[%c0_32, %c0_33], %66 {strides = array<i32>} : memref<8x1xf32, #tpu.memory_space<vmem>>, vector<8x1xf32>,
      %c0_34 = arith.constant 0 : index
      %c0_35 = arith.constant 0 : index
      %68 = vector.load %arg10[%c0_34, %c0_35] : memref<8x1xf32, #tpu.memory_space<vmem>>, vector<8x1xf32>
      %cst_36 = arith.constant dense<0.000000e+00> : vector<8xf32>
      %69 = vector.multi_reduction <add>, %40, %cst_36 [1] : vector<8x128xf32> to vector<8xf32>
      %70 = vector.shape_cast %69 : vector<8xf32> to vector<8x1xf32>
      %71 = arith.addf %68, %70 : vector<8x1xf32>
      %c0_37 = arith.constant 0 : index
      %c0_38 = arith.constant 0 : index
      %72 = vector.load %arg10[%c0_37, %c0_38] : memref<8x1xf32, #tpu.memory_space<vmem>>, vector<8x1xf32>
      tpu.vector_store %arg10[%c0_37, %c0_38], %71 {strides = array<i32>} : memref<8x1xf32, #tpu.memory_space<vmem>>, vector<8x1xf32>,
    } else {
    }
    %true = arith.constant true
    %22 = arith.xori %19, %true : i1
    %23 = arith.extui %22 : i1 to i32
    %c0_i32_12 = arith.constant 0 : i32
    %24 = arith.cmpi ne, %23, %c0_i32_12 : i32
    scf.if %24 {
      %28 = arith.extui %10 : vector<8x128xi1> to vector<8x128xi32>
      %29 = arith.sitofp %28 : vector<8x128xi32> to vector<8x128xf32>
      %cst_15 = arith.constant dense<0xFF800000> : vector<8xf32>
      %30 = vector.multi_reduction <maximumf>, %5, %cst_15 [1] : vector<8x128xf32> to vector<8xf32>
      %31 = vector.shape_cast %30 : vector<8xf32> to vector<8x1xf32>
      %c0_16 = arith.constant 0 : index
      %c0_17 = arith.constant 0 : index
      %32 = vector.load %arg7[%c0_16, %c0_17] : memref<8x1xf32, #tpu.memory_space<vmem>>, vector<8x1xf32>
      %33 = arith.maximumf %32, %31 : vector<8x1xf32>
      %c0_18 = arith.constant 0 : index
      %c0_19 = arith.constant 0 : index
      %34 = vector.load %arg7[%c0_18, %c0_19] : memref<8x1xf32, #tpu.memory_space<vmem>>, vector<8x1xf32>
      %35 = arith.subf %34, %33 : vector<8x1xf32>
      %36 = math.exp %35 : vector<8x1xf32>
      %37 = vector.broadcast %33 : vector<8x1xf32> to vector<8x128xf32>
      %38 = arith.subf %5, %37 : vector<8x128xf32>
      %39 = math.exp %38 : vector<8x128xf32>
      %c0_20 = arith.constant 0 : index
      %c0_21 = arith.constant 0 : index
      %40 = vector.load %arg8[%c0_20, %c0_21] : memref<8x1xf32, #tpu.memory_space<vmem>>, vector<8x1xf32>
      %41 = arith.mulf %36, %40 : vector<8x1xf32>
      %cst_22 = arith.constant dense<0.000000e+00> : vector<8xf32>
      %42 = vector.multi_reduction <add>, %39, %cst_22 [1] : vector<8x128xf32> to vector<8xf32>
      %43 = vector.shape_cast %42 : vector<8xf32> to vector<8x1xf32>
      %44 = arith.addf %41, %43 : vector<8x1xf32>
      %c0_23 = arith.constant 0 : index
      %c0_24 = arith.constant 0 : index
      %45 = vector.load %arg8[%c0_23, %c0_24] : memref<8x1xf32, #tpu.memory_space<vmem>>, vector<8x1xf32>
      tpu.vector_store %arg8[%c0_23, %c0_24], %44 {strides = array<i32>} : memref<8x1xf32, #tpu.memory_space<vmem>>, vector<8x1xf32>,
      %c0_25 = arith.constant 0 : index
      %c0_26 = arith.constant 0 : index
      %46 = vector.load %arg7[%c0_25, %c0_26] : memref<8x1xf32, #tpu.memory_space<vmem>>, vector<8x1xf32>
      tpu.vector_store %arg7[%c0_25, %c0_26], %33 {strides = array<i32>} : memref<8x1xf32, #tpu.memory_space<vmem>>, vector<8x1xf32>,
      %c0_27 = arith.constant 0 : index
      %c0_28 = arith.constant 0 : index
      %47 = vector.load %arg9[%c0_27, %c0_28] : memref<8x1xf32, #tpu.memory_space<vmem>>, vector<8x1xf32>
      %48 = arith.mulf %29, %5 : vector<8x128xf32>
      %cst_29 = arith.constant dense<0.000000e+00> : vector<8xf32>
      %49 = vector.multi_reduction <add>, %48, %cst_29 [1] : vector<8x128xf32> to vector<8xf32>
      %50 = vector.shape_cast %49 : vector<8xf32> to vector<8x1xf32>
      %51 = arith.addf %47, %50 : vector<8x1xf32>
      %c0_30 = arith.constant 0 : index
      %c0_31 = arith.constant 0 : index
      %52 = vector.load %arg9[%c0_30, %c0_31] : memref<8x1xf32, #tpu.memory_space<vmem>>, vector<8x1xf32>
      tpu.vector_store %arg9[%c0_30, %c0_31], %51 {strides = array<i32>} : memref<8x1xf32, #tpu.memory_space<vmem>>, vector<8x1xf32>,
      %c0_32 = arith.constant 0 : index
      %c0_33 = arith.constant 0 : index
      %53 = vector.load %arg10[%c0_32, %c0_33] : memref<8x1xf32, #tpu.memory_space<vmem>>, vector<8x1xf32>
      %cst_34 = arith.constant dense<0.000000e+00> : vector<8xf32>
      %54 = vector.multi_reduction <add>, %29, %cst_34 [1] : vector<8x128xf32> to vector<8xf32>
      %55 = vector.shape_cast %54 : vector<8xf32> to vector<8x1xf32>
      %56 = arith.addf %53, %55 : vector<8x1xf32>
      %c0_35 = arith.constant 0 : index
      %c0_36 = arith.constant 0 : index
      %57 = vector.load %arg10[%c0_35, %c0_36] : memref<8x1xf32, #tpu.memory_space<vmem>>, vector<8x1xf32>
      tpu.vector_store %arg10[%c0_35, %c0_36], %56 {strides = array<i32>} : memref<8x1xf32, #tpu.memory_space<vmem>>, vector<8x1xf32>,
    } else {
    }
    %c0_i32_13 = arith.constant 0 : i32
    %25 = arith.cmpi eq, %arg1, %c0_i32_13 : i32
    %26 = arith.extui %25 : i1 to i32
    %c0_i32_14 = arith.constant 0 : i32
    %27 = arith.cmpi ne, %26, %c0_i32_14 : i32
    scf.if %27 {
      %c0_15 = arith.constant 0 : index
      %c0_16 = arith.constant 0 : index
      %28 = vector.load %arg10[%c0_15, %c0_16] : memref<8x1xf32, #tpu.memory_space<vmem>>, vector<8x1xf32>
      %c0_17 = arith.constant 0 : index
      %c0_18 = arith.constant 0 : index
      %29 = vector.load %arg7[%c0_17, %c0_18] : memref<8x1xf32, #tpu.memory_space<vmem>>, vector<8x1xf32>
      %c0_19 = arith.constant 0 : index
      %c0_20 = arith.constant 0 : index
      %30 = vector.load %arg8[%c0_19, %c0_20] : memref<8x1xf32, #tpu.memory_space<vmem>>, vector<8x1xf32>
      %31 = math.log %30 : vector<8x1xf32>
      %32 = arith.addf %29, %31 : vector<8x1xf32>
      %cst_21 = arith.constant 0.000000e+00 : f32
      %33 = vector.broadcast %cst_21 : f32 to vector<8x1xf32>
      %34 = arith.cmpf oeq, %28, %33 : vector<8x1xf32>
      %cst_22 = arith.constant 1.000000e+00 : f32
      %35 = vector.broadcast %cst_22 : f32 to vector<8x1xf32>
      %36 = arith.select %34, %35, %28 : vector<8x1xi1>, vector<8x1xf32>
      %c0_23 = arith.constant 0 : index
      %c0_24 = arith.constant 0 : index
      %37 = vector.load %arg9[%c0_23, %c0_24] : memref<8x1xf32, #tpu.memory_space<vmem>>, vector<8x1xf32>
      %38 = arith.mulf %28, %32 : vector<8x1xf32>
      %39 = arith.subf %37, %38 : vector<8x1xf32>
      %40 = arith.divf %39, %36 : vector<8x1xf32>
      %cst_25 = arith.constant -1.000000e+00 : f32
      %41 = vector.broadcast %cst_25 : f32 to vector<8x1xf32>
      %42 = arith.mulf %41, %40 : vector<8x1xf32>
      %c0_26 = arith.constant 0 : index
      %c0_27 = arith.constant 0 : index
      %43 = vector.load %arg6[%c0_26, %c0_27] : memref<8x1xf32, #tpu.memory_space<vmem>>, vector<8x1xf32>
      tpu.vector_store %arg6[%c0_26, %c0_27], %42 {strides = array<i32>} : memref<8x1xf32, #tpu.memory_space<vmem>>, vector<8x1xf32>,
    } else {
    }
    return
  }
  func.func @transform_0(%arg0: i32, %arg1: i32) -> (i32, i32) {
    %c0_i32 = arith.constant 0 : i32
    %c0_i32_0 = arith.constant 0 : i32
    return %arg0, %c0_i32 : i32, i32
  }
  func.func @transform_1(%arg0: i32, %arg1: i32) -> (i32, i32) {
    %c0_i32 = arith.constant 0 : i32
    %c0_i32_0 = arith.constant 0 : i32
    return %c0_i32, %arg1 : i32, i32
  }
  func.func @transform_2(%arg0: i32, %arg1: i32) -> (i32, i32) {
    %c0_i32 = arith.constant 0 : i32
    %c0_i32_0 = arith.constant 0 : i32
    return %arg0, %c0_i32 : i32, i32
  }
  func.func @transform_3(%arg0: i32, %arg1: i32) -> (i32, i32) {
    %c0_i32 = arith.constant 0 : i32
    %c0_i32_0 = arith.constant 0 : i32
    return %c0_i32, %arg1 : i32, i32
  }
  func.func @transform_4(%arg0: i32, %arg1: i32) -> (i32, i32) {
    %c0_i32 = arith.constant 0 : i32
    %c0_i32_0 = arith.constant 0 : i32
    return %arg0, %c0_i32 : i32, i32
  }
}

</mosaic_0001>

<llo_original>
// kernel: tpu_custom_call.1
$region0: #{tpu_custom_call.1}
  #allocation0 [shape = 'u32[]', space=smem, size = 0x4, offset = 0x4, fixed_abs, tag = 'smem constant byte address 0x4 - core index']
  #allocation1 [shape = 'u32[144,128]{1,0:T(1,128)}', space=vmem, size = 0x12000, scoped, tag = 'internal scratch']
  #allocation2 [shape = 'f32[8,1]{1,0:T(8,128)}', space=vmem, size = 0x1000, scoped, tag = 'scratch operand']
  #allocation3 [shape = 'f32[8,1]{1,0:T(8,128)}', space=vmem, size = 0x1000, scoped, tag = 'scratch operand']
  #allocation4 [shape = 'f32[8,1]{1,0:T(8,128)}', space=vmem, size = 0x1000, scoped, tag = 'scratch operand']
  #allocation5 [shape = 'f32[8,1]{1,0:T(8,128)}', space=vmem, size = 0x1000, scoped, tag = 'scratch operand']
  %s0 = inlined_call_operand.hbm [shape: bf16[16,32], index: 0, kind: input, shape index: {}]
  %s1 = inlined_call_operand.vmem [shape: bf16[32,128], index: 1, kind: input, shape index: {}]
  %s2 = inlined_call_operand.vmem [shape: s32[16,1], index: 2, kind: input, shape index: {}]
  %s3 = inlined_call_operand.vmem [shape: s32[1,128], index: 3, kind: input, shape index: {}]
  %s4 = inlined_call_operand.vmem [shape: f32[16,1], index: 4, kind: output, shape index: {}]
  %s5 = sld [smem:[#allocation0]]
  $region69: #{tpu_custom_call.1} parent=0
    _
  %s7 = ssub.s32 1, %s5
  %s8 = scalar_select 0, %s7, %s5
  $region1: #{tpu_custom_call.1} parent=0
    #allocation6 [shape = 'u8[4096]{0}', space=vmem, size = 0x1000, scoped, tag = 'input window, operand 0']
    #allocation7 [shape = 's32[2]{0}', space=sflag, size = 0x8, scoped, tag = 'scoped memory for tpu_custom_call.1']
    %9 = vsyncpa [#allocation7], 0
    %s10 = scalar_lea.sflag [#allocation7], 1
    %11 = vsyncpa %s10, 0
    loop: start=0, step=1, limit=4
    $region2: #{tpu_custom_call.1} parent=1 // loop_pre_header
      _
    $region3: #{tpu_custom_call.1} parent=1 // loop_header
      %s13 = sphi 0, %s17
      %p14 = scmp.ge.s32.totalorder %s13, 4
      %s20 = sphi 0, %s32
      %s21 = sphi 0, %s28
      %s22 = sphi 0, %s20
      %s23 = sphi 0, %s21
      %s24 = sphi 0, %s22
      %s25 = sphi 0, %s23
      %s35 = sphi 0, %s37
      %s38 = sphi 0, %s35
      %s39 = sphi 0, %s38
      %s55 = sphi 0, %s39
      %s61 = sphi 0, %s63
      %s64 = sphi 0, %s61
      %s65 = sphi 0, %s64
      %s81 = sphi 0, %s65
      %s87 = sphi 0, %s89
      %s90 = sphi 0, %s87
      %s91 = sphi 0, %s90
      %s107 = sphi 0, %s91
      %s113 = sphi 0, %s115
      %s116 = sphi 0, %s113
      %s117 = sphi 0, %s116
      %s133 = sphi 0, %s117
      %s139 = sphi 0, %s141
      %s142 = sphi 0, %s139
      %s143 = sphi 0, %s142
      %s159 = sphi 0, %s143
    $region4: #{tpu_custom_call.1} parent=1 // loop_header_branch
      %16 = sbr.rel (%p14) target = $region8
    $region5: #{tpu_custom_call.1} parent=1 // loop_body
      %s18 = ssub.s32 %s13, 1
      %s19 = ssub.s32 %s13, 2
      %s26 = sadd.s32 1, %s21
      %p27 = scmp.ge.s32.totalorder %s26, 1
      %s28 = scalar_select %p27, 0, %s26
      %s29 = sadd.s32 1, %s20
      %s30 = scalar_select %p27, %s29, %s20
      %p31 = scmp.ge.s32.totalorder %s30, 2
      %s32 = scalar_select %p31, 0, %s30
      %s33 = ssub.s32 %s20, %s32
      %p34 = scmp.eq.s32.totalorder %s33, 0
      %s36 = sadd.s32 %s35, 1
      %s37 = scalar_select %p34, %s35, %s36
      %p40 = pneg %p34
      %p41 = scmp.eq.s32.totalorder %s13, 1
      %p42 = por %p40, %p41
      %p43 = scmp.ne.s32.totalorder %s35, %s38
      %p44 = scmp.eq.s32.totalorder %s13, 0
      %p45 = por %p43, %p44
      %p46 = scmp.ne.s32.totalorder %s35, %s38
      %p47 = scmp.eq.s32.totalorder %s18, 1
      %p48 = por %p46, %p47
      %p49 = scmp.ne.s32.totalorder %s38, %s39
      %p50 = scmp.eq.s32.totalorder %s18, 0
      %p51 = por %p49, %p50
      %p52 = scmp.ne.s32.totalorder %s38, %s39
      %p53 = scmp.eq.s32.totalorder %s19, 1
      %p54 = por %p52, %p53
      %p56 = scmp.ne.s32.totalorder %s39, %s55
      %p57 = scmp.eq.s32.totalorder %s19, 0
      %p58 = por %p56, %p57
      %s59 = ssub.s32 %s21, %s28
      %p60 = scmp.eq.s32.totalorder %s59, 0
      %s62 = sadd.s32 %s61, 1
      %s63 = scalar_select %p60, %s61, %s62
      %p66 = pneg %p60
      %p67 = scmp.eq.s32.totalorder %s13, 1
      %p68 = por %p66, %p67
      %p69 = scmp.ne.s32.totalorder %s61, %s64
      %p70 = scmp.eq.s32.totalorder %s13, 0
      %p71 = por %p69, %p70
      %p72 = scmp.ne.s32.totalorder %s61, %s64
      %p73 = scmp.eq.s32.totalorder %s18, 1
      %p74 = por %p72, %p73
      %p75 = scmp.ne.s32.totalorder %s64, %s65
      %p76 = scmp.eq.s32.totalorder %s18, 0
      %p77 = por %p75, %p76
      %p78 = scmp.ne.s32.totalorder %s64, %s65
      %p79 = scmp.eq.s32.totalorder %s19, 1
      %p80 = por %p78, %p79
      %p82 = scmp.ne.s32.totalorder %s65, %s81
      %p83 = scmp.eq.s32.totalorder %s19, 0
      %p84 = por %p82, %p83
      %s85 = ssub.s32 %s20, %s32
      %p86 = scmp.eq.s32.totalorder %s85, 0
      %s88 = sadd.s32 %s87, 1
      %s89 = scalar_select %p86, %s87, %s88
      %p92 = pneg %p86
      %p93 = scmp.eq.s32.totalorder %s13, 1
      %p94 = por %p92, %p93
      %p95 = scmp.ne.s32.totalorder %s87, %s90
      %p96 = scmp.eq.s32.totalorder %s13, 0
      %p97 = por %p95, %p96
      %p98 = scmp.ne.s32.totalorder %s87, %s90
      %p99 = scmp.eq.s32.totalorder %s18, 1
      %p100 = por %p98, %p99
      %p101 = scmp.ne.s32.totalorder %s90, %s91
      %p102 = scmp.eq.s32.totalorder %s18, 0
      %p103 = por %p101, %p102
      %p104 = scmp.ne.s32.totalorder %s90, %s91
      %p105 = scmp.eq.s32.totalorder %s19, 1
      %p106 = por %p104, %p105
      %p108 = scmp.ne.s32.totalorder %s91, %s107
      %p109 = scmp.eq.s32.totalorder %s19, 0
      %p110 = por %p108, %p109
      %s111 = ssub.s32 %s21, %s28
      %p112 = scmp.eq.s32.totalorder %s111, 0
      %s114 = sadd.s32 %s113, 1
      %s115 = scalar_select %p112, %s113, %s114
      %p118 = pneg %p112
      %p119 = scmp.eq.s32.totalorder %s13, 1
      %p120 = por %p118, %p119
      %p121 = scmp.ne.s32.totalorder %s113, %s116
      %p122 = scmp.eq.s32.totalorder %s13, 0
      %p123 = por %p121, %p122
      %p124 = scmp.ne.s32.totalorder %s113, %s116
      %p125 = scmp.eq.s32.totalorder %s18, 1
      %p126 = por %p124, %p125
      %p127 = scmp.ne.s32.totalorder %s116, %s117
      %p128 = scmp.eq.s32.totalorder %s18, 0
      %p129 = por %p127, %p128
      %p130 = scmp.ne.s32.totalorder %s116, %s117
      %p131 = scmp.eq.s32.totalorder %s19, 1
      %p132 = por %p130, %p131
      %p134 = scmp.ne.s32.totalorder %s117, %s133
      %p135 = scmp.eq.s32.totalorder %s19, 0
      %p136 = por %p134, %p135
      %s137 = ssub.s32 %s20, %s32
      %p138 = scmp.eq.s32.totalorder %s137, 0
      %s140 = sadd.s32 %s139, 1
      %s141 = scalar_select %p138, %s139, %s140
      %p144 = pneg %p138
      %p145 = scmp.eq.s32.totalorder %s13, 1
      %p146 = por %p144, %p145
      %p147 = scmp.ne.s32.totalorder %s139, %s142
      %p148 = scmp.eq.s32.totalorder %s13, 0
      %p149 = por %p147, %p148
      %p150 = scmp.ne.s32.totalorder %s139, %s142
      %p151 = scmp.eq.s32.totalorder %s18, 1
      %p152 = por %p150, %p151
      %p153 = scmp.ne.s32.totalorder %s142, %s143
      %p154 = scmp.eq.s32.totalorder %s18, 0
      %p155 = por %p153, %p154
      %p156 = scmp.ne.s32.totalorder %s142, %s143
      %p157 = scmp.eq.s32.totalorder %s19, 1
      %p158 = por %p156, %p157
      %p160 = scmp.ne.s32.totalorder %s143, %s159
      %p161 = scmp.eq.s32.totalorder %s19, 0
      %p162 = por %p160, %p161
      %p163 = scmp.le.s32.totalorder 1, %s13
      %p164 = scmp.lt.s32.totalorder %s13, 3
      %p165 = pnand %p163, %p164
      %p166 = pneg %p165
      // Predicated region
      $region9: #{tpu_custom_call.1} parent=5 // pred_check
        _
      $region10: #{tpu_custom_call.1} parent=5 // pred_check_branch
        %168 = sbr.rel (%p165) target = $region12
      $region11: #{tpu_custom_call.1} parent=5 // pred_region
        %s169 = ssub.s32 %s13, 1
        // Predicated region
        $region13: #{tpu_custom_call.1} parent=11 // pred_check
          %p170 = pneg %p77
        $region14: #{tpu_custom_call.1} parent=11 // pred_check_branch
          %172 = sbr.rel (%p170) target = $region16
        $region15: #{tpu_custom_call.1} parent=11 // pred_region
          %p173 = scmp.lt.s32.totalorder %s23, 0
          %s174 = scalar_select %p173, %s23, 0
          %s175 = smul.addr %s174, 4
          %s176 = scalar_lea.vmem %s1, %s175
        $region16: #{tpu_custom_call.1} parent=11 // pred_fallthru
          _
        // Predicated region
        $region17: #{tpu_custom_call.1} parent=11 // pred_check
          %p177 = pneg %p129
        $region18: #{tpu_custom_call.1} parent=11 // pred_check_branch
          %179 = sbr.rel (%p177) target = $region20
        $region19: #{tpu_custom_call.1} parent=11 // pred_region
          %p180 = scmp.lt.s32.totalorder %s23, 0
          %s181 = scalar_select %p180, %s23, 0
          %s182 = scalar_lea.vmem %s3, %s181
        $region20: #{tpu_custom_call.1} parent=11 // pred_fallthru
          _
      $region12: #{tpu_custom_call.1} parent=5 // pred_fallthru
        _
      %p183 = scmp.lt.s32.totalorder %s13, 2
      // Predicated region
      $region21: #{tpu_custom_call.1} parent=5 // pred_check
        %p184 = pneg %p183
      $region22: #{tpu_custom_call.1} parent=5 // pred_check_branch
        %186 = sbr.rel (%p184) target = $region24
      $region23: #{tpu_custom_call.1} parent=5 // pred_region
        // Predicated region
        $region25: #{tpu_custom_call.1} parent=23 // pred_check
          %p187 = pneg %p45
        $region26: #{tpu_custom_call.1} parent=23 // pred_check_branch
          %189 = sbr.rel (%p187) target = $region28
        $region27: #{tpu_custom_call.1} parent=23 // pred_region
          %s190 = sand.u32 %s35, 1
          %s191 = scalar_lea.sflag [#allocation7], %s190
          %s192 = sand.u32 %s35, 1
          %s193 = smul.addr %s192, 4
          %s194 = scalar_lea.vmem [#allocation6], %s193
          %s196 = ssub.s32 64, 64
          %197 = vsyncadd %s191, %s196
          %s198 = smul.addr %s20, 64
          %s199 = scalar_lea.hbm %s0, %s198
          %s201 = sshll.u32 %s194, 4
          %s202 = int_to_ptr.vmem [resolvable:$true] %s201
          %204 = dma.hbm_to_vmem [thread:$0]  %s199, 64, %s202, %s191
        $region28: #{tpu_custom_call.1} parent=23 // pred_fallthru
          _
        // Predicated region
        $region29: #{tpu_custom_call.1} parent=23 // pred_check
          %p205 = pneg %p97
        $region30: #{tpu_custom_call.1} parent=23 // pred_check_branch
          %207 = sbr.rel (%p205) target = $region32
        $region31: #{tpu_custom_call.1} parent=23 // pred_region
          %p208 = scmp.lt.s32.totalorder %s20, 1
          %s209 = scalar_select %p208, %s20, 1
          %s210 = smul.addr %s209, 8
          %s211 = scalar_lea.vmem %s2, %s210
        $region32: #{tpu_custom_call.1} parent=23 // pred_fallthru
          _
      $region24: #{tpu_custom_call.1} parent=5 // pred_fallthru
        _
      %p212 = scmp.le.s32.totalorder 1, %s13
      %p213 = scmp.lt.s32.totalorder %s13, 3
      %p214 = pnand %p212, %p213
      %p215 = pneg %p214
      // Predicated region
      $region33: #{tpu_custom_call.1} parent=5 // pred_check
        _
      $region34: #{tpu_custom_call.1} parent=5 // pred_check_branch
        %217 = sbr.rel (%p214) target = $region36
      $region35: #{tpu_custom_call.1} parent=5 // pred_region
        %s218 = ssub.s32 %s13, 1
        %s219 = sand.u32 %s38, 1
        %s220 = scalar_lea.sflag [#allocation7], %s219
        %s221 = sand.u32 %s38, 1
        %s222 = smul.addr %s221, 4
        %s223 = scalar_lea.vmem [#allocation6], %s222
        // Predicated region
        $region37: #{tpu_custom_call.1} parent=35 // pred_check
          %p224 = pneg %p51
        $region38: #{tpu_custom_call.1} parent=35 // pred_check_branch
          %226 = sbr.rel (%p224) target = $region40
        $region39: #{tpu_custom_call.1} parent=35 // pred_region
          %227 = dma.done %s220, 64
        $region40: #{tpu_custom_call.1} parent=35 // pred_fallthru
          _
        %s228 = sand.u32 %s38, 1
        %s229 = scalar_lea.sflag [#allocation7], %s228
        %s230 = sand.u32 %s38, 1
        %s231 = smul.addr %s230, 4
        %s232 = scalar_lea.vmem [#allocation6], %s231
        %p233 = pneg %p51
        %p234 = pneg %p48
        %p235 = scmp.lt.s32.totalorder %s23, 0
        %s236 = scalar_select %p235, %s23, 0
        %s237 = smul.addr %s236, 4
        %s238 = scalar_lea.vmem %s1, %s237
        %p239 = pneg %p77
        %p240 = pneg %p74
        %p241 = scmp.lt.s32.totalorder %s22, 1
        %s242 = scalar_select %p241, %s22, 1
        %s243 = smul.addr %s242, 8
        %s244 = scalar_lea.vmem %s2, %s243
        %p245 = pneg %p103
        %p246 = pneg %p100
        %p247 = scmp.lt.s32.totalorder %s23, 0
        %s248 = scalar_select %p247, %s23, 0
        %s249 = scalar_lea.vmem %s3, %s248
        %p250 = pneg %p129
        %p251 = pneg %p126
        %p252 = pneg %p155
        %p253 = pneg %p152
        %p254 = scmp.lt.s32.totalorder %s22, 1
        %s255 = scalar_select %p254, %s22, 1
        %s256 = smul.addr %s255, 8
        %s257 = scalar_lea.vmem %s4, %s256
        %p258 = scmp.lt.s32.totalorder %s23, 0
        %s259 = scalar_select %p258, %s23, 0
        %s260 = smul.addr %s259, 4
        %s261 = scalar_lea.vmem %s1, %s260
        %p262 = scmp.lt.s32.totalorder %s22, 1
        %s263 = scalar_select %p262, %s22, 1
        %s264 = smul.addr %s263, 8
        %s265 = scalar_lea.vmem %s2, %s264
        %p266 = scmp.lt.s32.totalorder %s23, 0
        %s267 = scalar_select %p266, %s23, 0
        %s268 = scalar_lea.vmem %s3, %s267
        %p269 = scmp.lt.s32.totalorder %s22, 1
        %s270 = scalar_select %p269, %s22, 1
        %s271 = smul.addr %s270, 8
        %s272 = scalar_lea.vmem %s4, %s271
        %p274 = scmp.eq.s32.totalorder %s23, 0
        // Predicated region
        $region41: #{tpu_custom_call.1} parent=35 // pred_check
          %p275 = pneg %p274
        $region42: #{tpu_custom_call.1} parent=35 // pred_check_branch
          %277 = sbr.rel (%p275) target = $region44
        $region43: #{tpu_custom_call.1} parent=35 // pred_region
          %vm278 = vcmask 7168
          %279 = vst.msk [vmem:[#allocation2] sm:$0xff] %vm278, -inf
          %280 = vst.msk [vmem:[#allocation3] sm:$0xff] %vm278, 0.0
          %281 = vst.msk [vmem:[#allocation4] sm:$0xff] %vm278, 0.0
          %282 = vst.msk [vmem:[#allocation5] sm:$0xff] %vm278, 0.0
        $region44: #{tpu_custom_call.1} parent=35 // pred_fallthru
          _
        %v283 = vld [vmem:[%s223] sm:$0xf]
        %v284 = vld [vmem:[%s261] sm:$0xf]
        %v285 = vld [vmem:[%s261 + $0x4] sm:$0xf]
        %v286 = vld [vmem:[%s261 + $0x8] sm:$0xf]
        %v287 = vld [vmem:[%s261 + $0xc] sm:$0xf]
        %v292 = vunpack.c.l.b16 %v284
        %v293 = vunpack.c.l.b16 %v285
        %v294 = vunpack.c.l.b16 %v286
        %v295 = vunpack.c.l.b16 %v287
        %v296 = vpack.c.b16 %v293, %v292
        %v297 = vpack.c.b16 %v295, %v294
        %vm300 = vcmask 261120
        %v302 = vsel %vm300, %v283, 0
        %304 = vmatprep.subr.bf16.mxu0 0
        %305 = vmatpush1.bf16.msra.mxu0 0
        %306 = vmatprep.subr.bf16.mxu0 0
        %307 = vmatpush1.bf16.msra.mxu0 0
        %308 = vmatprep.subr.bf16.mxu0 0
        %309 = vmatpush1.bf16.msra.mxu0 0
        %310 = vmatprep.subr.bf16.mxu0 0
        %311 = vmatpush1.bf16.msra.mxu0 0
        %312 = vmatprep.subr.bf16.mxu0 0
        %313 = vmatpush1.bf16.msra.mxu0 0
        %314 = vmatprep.subr.bf16.mxu0 0
        %315 = vmatpush1.bf16.msra.mxu0 0
        %316 = vmatprep.subr.bf16.mxu0 0
        %317 = vmatpush1.bf16.msra.mxu0 %v297
        %318 = vmatprep.subr.bf16.mxu0 0
        %319 = vmatpush1.bf16.msra.mxu0 %v296
        %320 = vmatprep.subr.bf16.mxu0 0
        %321 = vmatpush2.bf16.msra.mxu0 0
        %322 = vmatprep.subr.bf16.mxu0 0
        %323 = vmatpush2.bf16.msra.mxu0 0
        %324 = vmatprep.subr.bf16.mxu0 0
        %325 = vmatpush2.bf16.msra.mxu0 0
        %326 = vmatprep.subr.bf16.mxu0 0
        %327 = vmatpush2.bf16.msra.mxu0 0
        %328 = vmatprep.subr.bf16.mxu0 0
        %329 = vmatpush2.bf16.msra.mxu0 0
        %330 = vmatprep.subr.bf16.mxu0 0
        %331 = vmatpush2.bf16.msra.mxu0 0
        %332 = vmatprep.subr.bf16.mxu0 0
        %333 = vmatpush2.bf16.msra.mxu0 0
        %334 = vmatprep.subr.bf16.mxu0 0
        %335 = vmatpush2.bf16.msra.mxu0 0
        %336 = vmatprep.mubr.bf16.mxu0 0
        %337 = vmatmul.mubr.bf16.gmra.mxu0 %v302
        %v338 = vpop.f32.mrf.mxu0
        %v339 = vadd.f32 0.0, %v338
        %v340 = vpop.f32.mrf.mxu0
        %v341 = vpop.f32.mrf.mxu0
        %v342 = vpop.f32.mrf.mxu0
        %343 = vdwg.mxu0
        %v344 = vld [vmem:[%s265] sm:$0xff]
        %v345 = vld [vmem:[%s268] sm:$0x1]
        %346 = vset.pattern.permute.xlu0 0
        %347 = vperm.xlu0 %346, %v344
        %v348 = vpop.permute.xlu0 %347
        %v349 = vlaneseq
        %v350 = vshrl.u32 %v349, 7
        %v351 = vsub.s32 0, %v350
        %v352 = vrot.slane %v345, %v351
        %vm353 = vcmp.eq.s32.totalorder %v348, %v352
        %s354 = smul.u32 %s22, 8
        %s355 = smul.u32 %s23, 128
        %s356 = sadd.s32 %s355, 128
        %p357 = scmp.lt.s32.totalorder %s354, %s356
        %s358 = sadd.s32 %s354, 8
        %p359 = scmp.lt.s32.totalorder %s355, %s358
        %p360 = pnand %p357, %p359
        %p361 = pneg %p360
        %p362 = por %p361, %p274
        // Predicated region
        $region45: #{tpu_custom_call.1} parent=35 // pred_check
          %p363 = pneg %p362
        $region46: #{tpu_custom_call.1} parent=35 // pred_check_branch
          %365 = sbr.rel (%p363) target = $region48
        $region47: #{tpu_custom_call.1} parent=35 // pred_region
          %v366 = vlaneseq
          %v367 = vshrl.u32 %v366, 7
          %v368 = vstv %s354
          %v369 = vadd.s32 %v368, %v367
          %v370 = vlaneseq
          %v371 = vand.u32 %v370, 127
          %v372 = vstv %s355
          %v373 = vadd.s32 %v372, %v371
          %vm374 = vcmp.lt.s32.totalorder %v373, 16
          %vm375 = vcmp.ne.s32.totalorder %v369, %v373
          %vm376 = vmand %vm374, %vm375
          %vm377 = vmand %vm353, %vm376
          %v378 = vsel %vm377, 1, 0
          %v379 = vcvt.s32.f32 %v378
          %v380 = vsel %vm374, %v339, -inf
          %381 = vmax.xlane.f32.xlu0 %v380
          %v382 = vpop.xlane.xlu0 %381
          %v383 = vld [vmem:[#allocation2] sm:$0xff]
          %v384 = vmax.f32 %v383, %v382
          %v385 = vsub.f32 %v383, %v384
          %v386 = vmul.f32 %v385, 1.442695
          %v387 = vpow.pop %v386
          %389 = vset.pattern.permute.xlu0 0
          %390 = vperm.xlu0 %389, %v384
          %v391 = vpop.permute.xlu0 %390
          %v393 = vsub.f32 %v339, %v391
          %v394 = vmul.f32 %v393, 1.442695
          %v395 = vpow.pop %v394
          %v396 = vsel %vm376, %v395, 0.0
          %v397 = vld [vmem:[#allocation3] sm:$0xff]
          %v398 = vmul.f32 %v387, %v397
          %399 = vadd.xlane.f32.xlu0 %v396
          %v400 = vpop.xlane.xlu0 %399
          %v401 = vadd.f32 %v398, %v400
          %vm402 = vcmask 7168
          %403 = vst.msk [vmem:[#allocation3] sm:$0xff] %vm402, %v401
          %404 = vst.msk [vmem:[#allocation2] sm:$0xff] %vm402, %v384
          %v405 = vld [vmem:[#allocation4] sm:$0xff]
          %v406 = vmul.f32 %v379, %v339
          %407 = vadd.xlane.f32.xlu0 %v406
          %v408 = vpop.xlane.xlu0 %407
          %v409 = vadd.f32 %v405, %v408
          %410 = vst.msk [vmem:[#allocation4] sm:$0xff] %vm402, %v409
          %v411 = vld [vmem:[#allocation5] sm:$0xff]
          %412 = vadd.xlane.f32.xlu0 %v379
          %v413 = vpop.xlane.xlu0 %412
          %v414 = vadd.f32 %v411, %v413
          %415 = vst.msk [vmem:[#allocation5] sm:$0xff] %vm402, %v414
        $region48: #{tpu_custom_call.1} parent=35 // pred_fallthru
          _
        %p416 = pneg %p362
        // Predicated region
        $region49: #{tpu_custom_call.1} parent=35 // pred_check
          _
        $region50: #{tpu_custom_call.1} parent=35 // pred_check_branch
          %418 = sbr.rel (%p362) target = $region52
        $region51: #{tpu_custom_call.1} parent=35 // pred_region
          %v419 = vsel %vm353, 1, 0
          %v420 = vcvt.s32.f32 %v419
          %421 = vmax.xlane.f32.xlu0 %v339
          %v422 = vpop.xlane.xlu0 %421
          %v423 = vld [vmem:[#allocation2] sm:$0xff]
          %v424 = vmax.f32 %v423, %v422
          %v425 = vsub.f32 %v423, %v424
          %v426 = vmul.f32 %v425, 1.442695
          %v427 = vpow.pop %v426
          %429 = vset.pattern.permute.xlu0 0
          %430 = vperm.xlu0 %429, %v424
          %v431 = vpop.permute.xlu0 %430
          %v433 = vsub.f32 %v339, %v431
          %v434 = vmul.f32 %v433, 1.442695
          %v435 = vpow.pop %v434
          %v436 = vld [vmem:[#allocation3] sm:$0xff]
          %v437 = vmul.f32 %v427, %v436
          %438 = vadd.xlane.f32.xlu0 %v435
          %v439 = vpop.xlane.xlu0 %438
          %v440 = vadd.f32 %v437, %v439
          %vm441 = vcmask 7168
          %442 = vst.msk [vmem:[#allocation3] sm:$0xff] %vm441, %v440
          %443 = vst.msk [vmem:[#allocation2] sm:$0xff] %vm441, %v424
          %v444 = vld [vmem:[#allocation4] sm:$0xff]
          %v445 = vmul.f32 %v420, %v339
          %446 = vadd.xlane.f32.xlu0 %v445
          %v447 = vpop.xlane.xlu0 %446
          %v448 = vadd.f32 %v444, %v447
          %449 = vst.msk [vmem:[#allocation4] sm:$0xff] %vm441, %v448
          %v450 = vld [vmem:[#allocation5] sm:$0xff]
          %451 = vadd.xlane.f32.xlu0 %v420
          %v452 = vpop.xlane.xlu0 %451
          %v453 = vadd.f32 %v450, %v452
          %454 = vst.msk [vmem:[#allocation5] sm:$0xff] %vm441, %v453
        $region52: #{tpu_custom_call.1} parent=35 // pred_fallthru
          _
        // Predicated region
        $region53: #{tpu_custom_call.1} parent=35 // pred_check
          %p455 = pneg %p274
        $region54: #{tpu_custom_call.1} parent=35 // pred_check_branch
          %457 = sbr.rel (%p455) target = $region56
        $region55: #{tpu_custom_call.1} parent=35 // pred_region
          %v458 = vld [vmem:[#allocation5] sm:$0xff]
          %v459 = vld [vmem:[#allocation2] sm:$0xff]
          %v460 = vld [vmem:[#allocation3] sm:$0xff]
          %v461 = vlog2.pop %v460
          %v462 = vmul.f32 %v461, 0.6931472
          %v463 = vadd.f32 %v459, %v462
          %vm464 = vcmp.eq.f32.partialorder %v458, 0.0
          %v465 = vsel %vm464, 1.0, %v458
          %v466 = vld [vmem:[#allocation4] sm:$0xff]
          %v467 = vmul.f32 %v458, %v463
          %v468 = vsub.f32 %v466, %v467
          %v469 = vrcp.pop %v465
          %v470 = vmul.f32 %v468, %v469
          %v471 = vmul.f32 %v470, -1.0
          %vm472 = vcmask 7168
          %473 = vst.msk [vmem:[%s272] sm:$0xff] %vm472, %v471
        $region56: #{tpu_custom_call.1} parent=35 // pred_fallthru
          _
        %p474 = scmp.lt.s32.totalorder %s22, 1
        %s475 = scalar_select %p474, %s22, 1
        %s476 = smul.addr %s475, 8
        %s477 = scalar_lea.vmem %s4, %s476
        // Predicated region
        $region57: #{tpu_custom_call.1} parent=35 // pred_check
          %p478 = pneg %p152
        $region58: #{tpu_custom_call.1} parent=35 // pred_check_branch
          %480 = sbr.rel (%p478) target = $region60
        $region59: #{tpu_custom_call.1} parent=35 // pred_region
          _
        $region60: #{tpu_custom_call.1} parent=35 // pred_fallthru
          _
      $region36: #{tpu_custom_call.1} parent=5 // pred_fallthru
        _
      %p481 = scmp.le.s32.totalorder 2, %s13
      // Predicated region
      $region61: #{tpu_custom_call.1} parent=5 // pred_check
        %p482 = pneg %p481
      $region62: #{tpu_custom_call.1} parent=5 // pred_check_branch
        %484 = sbr.rel (%p482) target = $region64
      $region63: #{tpu_custom_call.1} parent=5 // pred_region
        %s485 = ssub.s32 %s13, 2
        // Predicated region
        $region65: #{tpu_custom_call.1} parent=63 // pred_check
          %p486 = pneg %p158
        $region66: #{tpu_custom_call.1} parent=63 // pred_check_branch
          %488 = sbr.rel (%p486) target = $region68
        $region67: #{tpu_custom_call.1} parent=63 // pred_region
          %p489 = scmp.lt.s32.totalorder %s24, 1
          %s490 = scalar_select %p489, %s24, 1
          %s491 = smul.addr %s490, 8
          %s492 = scalar_lea.vmem %s4, %s491
        $region68: #{tpu_custom_call.1} parent=63 // pred_fallthru
          _
      $region64: #{tpu_custom_call.1} parent=5 // pred_fallthru
        _
    $region6: #{tpu_custom_call.1} parent=1 // loop_footer
      %s17 = sadd.s32 1, %s13
    $region7: #{tpu_custom_call.1} parent=1 // loop_footer_branch
      %12 = sbr.rel target = $region3
    $region8: #{tpu_custom_call.1} parent=1 // loop_exit
      _
    %493 = vsyncpa [#allocation7], 1
    %s494 = scalar_lea.sflag [#allocation7], 1
    %495 = vsyncpa %s494, 1

</llo_original>
